<compile_context>
chip_gen: v7x
topology: tpu7x:2x2x1
jax: 0.10.0
libtpu: 0.0.40
codegen_flags: <defaults>
</compile_context>

<pallas_src>
import math
from functools import partial

import jax
import jax.numpy as jnp
from jax.experimental import pallas as pl
from jax.experimental.pallas import tpu as pltpu


_SQRT_2_OVER_PI = 0.7978845608028654


def _gelu_tanh(x):
    # TODO(synk): PyTorch nn.GELU() defaults to the exact erf form; the tanh
    # approximation is used for robust Mosaic lowering (max abs diff ~3e-4).
    return 0.5 * x * (1.0 + jnp.tanh(_SQRT_2_OVER_PI * (x + 0.044715 * x * x * x)))


def _round_up(x, m):
    return ((x + m - 1) // m) * m


def _pick_block_m(M, target):
    """Largest row block <= target that divides M and is sublane friendly."""
    if M <= target:
        return M
    start = (min(target, M) // 8) * 8
    for bm in range(start, 7, -8):
        if M % bm == 0:
            return bm
    return None


# -----------------------------------------------------------------------------
# Kernel 1: fused LayerNorm + Linear (qkv projection), row-tiled over M = B*N
# -----------------------------------------------------------------------------
def _ln_linear_kernel(x_ref, g_ref, b_ref, w_ref, wb_ref, o_ref, *, eps):
    x = x_ref[...].astype(jnp.float32)
    mu = jnp.mean(x, axis=-1, keepdims=True)
    cen = x - mu
    var = jnp.mean(cen * cen, axis=-1, keepdims=True)
    xn = cen * jax.lax.rsqrt(var + eps)
    xn = xn * g_ref[...] + b_ref[...]
    # bf16 MXU operands, f32 accumulation
    y = jnp.dot(xn.astype(jnp.bfloat16), w_ref[...],
                preferred_element_type=jnp.float32) + wb_ref[...]
    o_ref[...] = y.astype(o_ref.dtype)


def _ln_linear(x2d, gamma, beta, w_bf16, bias, *, eps=1e-5, target_bm=512):
    M, C = x2d.shape
    D = w_bf16.shape[1]
    bm = _pick_block_m(M, target_bm)
    Mp, xp = M, x2d
    if bm is None:                       # ragged fallback (not hit in the demo)
        bm = min(target_bm, _round_up(M, 8))
        Mp = _round_up(M, bm)
        xp = jnp.pad(x2d, ((0, Mp - M), (0, 0)))
    out = pl.pallas_call(
        partial(_ln_linear_kernel, eps=eps),
        out_shape=jax.ShapeDtypeStruct((Mp, D), x2d.dtype),
        grid=(Mp // bm,),
        in_specs=[
            pl.BlockSpec((bm, C), lambda i: (i, 0)),
            pl.BlockSpec((1, C), lambda i: (0, 0)),
            pl.BlockSpec((1, C), lambda i: (0, 0)),
            pl.BlockSpec((C, D), lambda i: (0, 0)),   # weight stays VMEM-resident
            pl.BlockSpec((1, D), lambda i: (0, 0)),
        ],
        out_specs=pl.BlockSpec((bm, D), lambda i: (i, 0)),
        compiler_params=pltpu.CompilerParams(dimension_semantics=("parallel",)),
    )(xp, gamma.reshape(1, C), beta.reshape(1, C), w_bf16, bias.reshape(1, D))
    return out[:M] if Mp != M else out


# -----------------------------------------------------------------------------
# Kernel 2: per-image attention + output projection + residual (sr_ratio=1 path)
# -----------------------------------------------------------------------------
def _attn_proj_kernel(qkv_ref, x_ref, pw_ref, pb_ref, o_ref, *, nh, hd):
    C = nh * hd
    qkv = qkv_ref[0].astype(jnp.float32)            # (N, 3C)
    N = qkv.shape[0]
    xres = x_ref[0].astype(jnp.float32)             # (N, C) residual input
    pw = pw_ref[...]                                # (C, C) bf16 proj weight
    acc = jnp.zeros((N, C), jnp.float32)
    for h in range(nh):                             # static unroll over heads
        q = qkv[:, h * hd:(h + 1) * hd].astype(jnp.bfloat16)        # scale folded in
        k = qkv[:, C + h * hd:C + (h + 1) * hd].astype(jnp.bfloat16)
        v = qkv[:, 2 * C + h * hd:2 * C + (h + 1) * hd].astype(jnp.bfloat16)
        s = jax.lax.dot_general(q, k, (((1,), (1,)), ((), ())),
                                preferred_element_type=jnp.float32)  # (N, N)
        s = s - jnp.max(s, axis=-1, keepdims=True)
        p = jnp.exp(s)
        p = p * pl.reciprocal(jnp.sum(p, axis=-1, keepdims=True), approx=True)
        o = jnp.dot(p.astype(jnp.bfloat16), v, preferred_element_type=jnp.float32)
        # fold the output projection in per head: rows [h*hd, (h+1)*hd) of W_proj
        acc = acc + jnp.dot(o.astype(jnp.bfloat16), pw[h * hd:(h + 1) * hd, :],
                            preferred_element_type=jnp.float32)
    o_ref[0] = (xres + acc + pb_ref[...]).astype(o_ref.dtype)


def _attention_proj_residual(qkv3d, x3d, proj_w_bf16, proj_b, *, nh, hd):
    B, N, C3 = qkv3d.shape
    C = nh * hd
    return pl.pallas_call(
        partial(_attn_proj_kernel, nh=nh, hd=hd),
        out_shape=jax.ShapeDtypeStruct((B, N, C), x3d.dtype),
        grid=(B,),
        in_specs=[
            pl.BlockSpec((1, N, C3), lambda b: (b, 0, 0)),
            pl.BlockSpec((1, N, C), lambda b: (b, 0, 0)),
            pl.BlockSpec((C, C), lambda b: (0, 0)),
            pl.BlockSpec((1, C), lambda b: (0, 0)),
        ],
        out_specs=pl.BlockSpec((1, N, C), lambda b: (b, 0, 0)),
        compiler_params=pltpu.CompilerParams(dimension_semantics=("parallel",)),
    )(qkv3d, x3d, proj_w_bf16, proj_b.reshape(1, C))


# -----------------------------------------------------------------------------
# Kernel 3: per-image fused MLP branch
#           LN2 -> fc1 -> depthwise 3x3 (pad=1) -> GELU -> fc2 -> +residual
# -----------------------------------------------------------------------------
def _mlp_fused_kernel(x_ref, g_ref, b_ref, w1_ref, b1_ref, dw_ref, dwb_ref,
                      w2_ref, b2_ref, o_ref, pad_ref, *, H, W, eps):
    hid = w1_ref.shape[1]
    x = x_ref[0].astype(jnp.float32)                    # (N, C)
    # LayerNorm2
    mu = jnp.mean(x, axis=-1, keepdims=True)
    cen = x - mu
    var = jnp.mean(cen * cen, axis=-1, keepdims=True)
    xn = (cen * jax.lax.rsqrt(var + eps)) * g_ref[...] + b_ref[...]
    # fc1 (bf16 MXU operands, f32 accumulation) -> (N, hidden) stays in VMEM
    h = jnp.dot(xn.astype(jnp.bfloat16), w1_ref[...],
                preferred_element_type=jnp.float32) + b1_ref[...]
    # depthwise 3x3 conv, padding=1, channels-last (hidden on lanes);
    # the 1-pixel halo lives in a zero-filled VMEM scratch (no host-side pad)
    pad_ref[...] = jnp.zeros_like(pad_ref)
    pad_ref[1:H + 1, 1:W + 1, :] = h.reshape(H, W, hid)
    w_dw = dw_ref[...].astype(jnp.float32)              # (3, 3, hidden)
    acc = jnp.zeros((H, W, hid), jnp.float32)
    for di in range(3):
        for dj in range(3):
            acc = acc + pad_ref[di:di + H, dj:dj + W, :] * w_dw[di, dj]
    acc = acc + dwb_ref[...].reshape(1, 1, hid)
    hact = _gelu_tanh(acc).reshape(H * W, hid)
    # fc2 + bias + residual
    y = jnp.dot(hact.astype(jnp.bfloat16), w2_ref[...],
                preferred_element_type=jnp.float32) + b2_ref[...]
    o_ref[0] = (x + y).astype(o_ref.dtype)


def _mlp_fused(x3d, ln_g, ln_b, fc1_w_bf16, fc1_b, dw_w, dw_b, fc2_w_bf16,
               fc2_b, *, H, W, eps=1e-5):
    B, N, C = x3d.shape
    hid = fc1_w_bf16.shape[1]
    return pl.pallas_call(
        partial(_mlp_fused_kernel, H=H, W=W, eps=eps),
        out_shape=jax.ShapeDtypeStruct((B, N, C), x3d.dtype),
        grid=(B,),
        in_specs=[
            pl.BlockSpec((1, N, C), lambda b: (b, 0, 0)),
            pl.BlockSpec((1, C), lambda b: (0, 0)),
            pl.BlockSpec((1, C), lambda b: (0, 0)),
            pl.BlockSpec((C, hid), lambda b: (0, 0)),
            pl.BlockSpec((1, hid), lambda b: (0, 0)),
            pl.BlockSpec((3, 3, hid), lambda b: (0, 0, 0)),
            pl.BlockSpec((1, hid), lambda b: (0, 0)),
            pl.BlockSpec((hid, C), lambda b: (0, 0)),
            pl.BlockSpec((1, C), lambda b: (0, 0)),
        ],
        out_specs=pl.BlockSpec((1, N, C), lambda b: (b, 0, 0)),
        scratch_shapes=[pltpu.VMEM((H + 2, W + 2, hid), jnp.float32)],
        compiler_params=pltpu.CompilerParams(dimension_semantics=("parallel",)),
    )(x3d, ln_g.reshape(1, C), ln_b.reshape(1, C), fc1_w_bf16,
      fc1_b.reshape(1, hid), dw_w, dw_b.reshape(1, hid), fc2_w_bf16,
      fc2_b.reshape(1, C))


# -----------------------------------------------------------------------------
# Module-equivalent wrapper
# -----------------------------------------------------------------------------
class BlockPallas:
    """JAX/Pallas equivalent of the PVTv2 `Block` (default sr_ratio=1, linear=False)."""

    def __init__(self, dim, num_heads, mlp_ratio=4.0, qkv_bias=False,
                 qk_scale=None, sr_ratio=1, linear=False, key=None):
        assert dim % num_heads == 0
        # TODO(synk): only the default sr_ratio=1 / linear=False Attention branch
        # is implemented (no spatial-reduction conv / adaptive avg-pool path).
        assert sr_ratio == 1 and not linear
        self.dim = dim
        self.num_heads = num_heads
        self.head_dim = dim // num_heads
        self.scale = qk_scale or self.head_dim ** (-0.5)
        self.hidden = int(dim * mlp_ratio)

        if key is None:
            key = jax.random.PRNGKey(0)
        ks = jax.random.split(key, 14)

        def trunc(k, shape, std=0.02):
            return std * jax.random.truncated_normal(k, -2.0, 2.0, shape,
                                                     dtype=jnp.float32)

        # LayerNorm affine params (PyTorch inits them to 1/0; small random values
        # are used here so the self-check exercises the affine code path).
        self.ln1_w = 1.0 + 0.1 * jax.random.normal(ks[6], (dim,), jnp.float32)
        self.ln1_b = 0.05 * jax.random.normal(ks[7], (dim,), jnp.float32)
        self.ln2_w = 1.0 + 0.1 * jax.random.normal(ks[8], (dim,), jnp.float32)
        self.ln2_b = 0.05 * jax.random.normal(ks[9], (dim,), jnp.float32)

        # Attention projections, stored (in, out) so kernels compute x @ W + b.
        self.q_w_f32 = trunc(ks[0], (dim, dim))
        self.kv_w_f32 = trunc(ks[1], (dim, 2 * dim))
        self.q_b_f32 = jnp.zeros((dim,), jnp.float32)          # qkv_bias=False
        self.kv_b_f32 = jnp.zeros((2 * dim,), jnp.float32)
        # attention scale folded into the q columns / q bias; bf16 MXU copy
        self.qkv_w = jnp.concatenate(
            [self.q_w_f32 * self.scale, self.kv_w_f32], axis=1).astype(jnp.bfloat16)
        self.qkv_b = jnp.concatenate([self.q_b_f32 * self.scale, self.kv_b_f32])

        self.proj_w_f32 = trunc(ks[2], (dim, dim))
        self.proj_w = self.proj_w_f32.astype(jnp.bfloat16)
        self.proj_b = 0.02 * jax.random.normal(ks[10], (dim,), jnp.float32)

        # MLP
        self.fc1_w_f32 = trunc(ks[3], (dim, self.hidden))
        self.fc1_w = self.fc1_w_f32.astype(jnp.bfloat16)
        self.fc1_b = 0.02 * jax.random.normal(ks[11], (self.hidden,), jnp.float32)
        self.fc2_w_f32 = trunc(ks[4], (self.hidden, dim))
        self.fc2_w = self.fc2_w_f32.astype(jnp.bfloat16)
        self.fc2_b = 0.02 * jax.random.normal(ks[12], (dim,), jnp.float32)
        # Depthwise 3x3 conv: PyTorch weight (C,1,3,3), std = sqrt(2/(3*3*C/groups))
        dw_std = math.sqrt(2.0 / 9.0)
        self.dw_w_oihw = dw_std * jax.random.normal(
            ks[5], (self.hidden, 1, 3, 3), dtype=jnp.float32)
        self.dw_w = self.dw_w_oihw.reshape(self.hidden, 3, 3).transpose(1, 2, 0)
        self.dw_b = 0.02 * jax.random.normal(ks[13], (self.hidden,), jnp.float32)

    def __call__(self, x, H, W):
        B, N, C = x.shape
        assert N == H * W
        x2d = x.reshape(B * N, C)

        # ---- attention branch: x + proj(attn(norm1(x))) ----
        qkv = _ln_linear(x2d, self.ln1_w, self.ln1_b, self.qkv_w, self.qkv_b)
        qkv3d = qkv.reshape(B, N, 3 * C)          # free row-major reshape
        x1 = _attention_proj_residual(qkv3d, x, self.proj_w, self.proj_b,
                                      nh=self.num_heads, hd=self.head_dim)

        # ---- MLP branch: x1 + fc2(gelu(dwconv(fc1(norm2(x1))))) ----
        out = _mlp_fused(x1, self.ln2_w, self.ln2_b, self.fc1_w, self.fc1_b,
                         self.dw_w, self.dw_b, self.fc2_w, self.fc2_b, H=H, W=W)
        return out


# -----------------------------------------------------------------------------
# Pure-JAX reference (high-precision f32) for self-check
# -----------------------------------------------------------------------------
def _reference_block(m, x, H, W):
    B, N, C = x.shape
    nh, hd = m.num_heads, m.head_dim
    hp = jax.lax.Precision.HIGHEST

    def ln(z, w, b, eps=1e-5):
        mu = jnp.mean(z, axis=-1, keepdims=True)
        var = jnp.mean((z - mu) ** 2, axis=-1, keepdims=True)
        return (z - mu) / jnp.sqrt(var + eps) * w + b

    # attention
    xn = ln(x, m.ln1_w, m.ln1_b)
    q = jnp.matmul(xn, m.q_w_f32, precision=hp) + m.q_b_f32
    q = q.reshape(B, N, nh, hd).transpose(0, 2, 1, 3)
    kv = jnp.matmul(xn, m.kv_w_f32, precision=hp) + m.kv_b_f32
    kv = kv.reshape(B, N, 2, nh, hd).transpose(2, 0, 3, 1, 4)
    k, v = kv[0], kv[1]
    attn = jnp.einsum("bhqd,bhkd->bhqk", q, k, precision=hp) * m.scale
    attn = jax.nn.softmax(attn, axis=-1)
    o = jnp.einsum("bhqk,bhkd->bhqd", attn, v, precision=hp)
    o = o.transpose(0, 2, 1, 3).reshape(B, N, C)
    o = jnp.matmul(o, m.proj_w_f32, precision=hp) + m.proj_b
    x = x + o

    # mlp
    xn2 = ln(x, m.ln2_w, m.ln2_b)
    h = jnp.matmul(xn2, m.fc1_w_f32, precision=hp) + m.fc1_b
    h_nchw = h.reshape(B, H, W, m.hidden).transpose(0, 3, 1, 2)
    dw = jax.lax.conv_general_dilated(
        h_nchw, m.dw_w_oihw, window_strides=(1, 1), padding=((1, 1), (1, 1)),
        dimension_numbers=("NCHW", "OIHW", "NCHW"),
        feature_group_count=m.hidden, precision=hp)
    dw = dw + m.dw_b[None, :, None, None]
    dw = dw.transpose(0, 2, 3, 1).reshape(B, N, m.hidden)
    hact = _gelu_tanh(dw)
    out = jnp.matmul(hact, m.fc2_w_f32, precision=hp) + m.fc2_b
    return x + out


if __name__ == "__main__":
    key = jax.random.PRNGKey(0)
    k_x, k_p = jax.random.split(key)

    B, H, W = 2, 8, 8
    dim, num_heads, mlp_ratio = 32, 4, 4.0
    N = H * W

    x = jax.random.normal(k_x, (B, N, dim), dtype=jnp.float32)
    blk = BlockPallas(dim=dim, num_heads=num_heads, mlp_ratio=mlp_ratio,
                      qkv_bias=False, sr_ratio=1, linear=False, key=k_p)

    out = jax.block_until_ready(blk(x, H, W))
    ref = _reference_block(blk, x, H, W)

    assert out.shape == (B, N, dim)
    err = float(jnp.max(jnp.abs(out - ref)))
    # bf16 MXU operands + approximate softmax reciprocal vs. f32 reference
    assert jnp.allclose(out, ref, atol=3e-2, rtol=3e-2), f"max abs err {err}"
    print("KERNEL_OK")
</pallas_src>

<mosaic_0001>
module attributes {stable_mosaic.version = 11 : i64} {
  func.func @_ln_linear_kernel(%arg0: i32, %arg1: memref<128x32xf32, #tpu.memory_space<vmem>>, %arg2: memref<1x32xf32, #tpu.memory_space<vmem>>, %arg3: memref<1x32xf32, #tpu.memory_space<vmem>>, %arg4: memref<32x96xbf16, #tpu.memory_space<vmem>>, %arg5: memref<1x96xf32, #tpu.memory_space<vmem>>, %arg6: memref<128x96xf32, #tpu.memory_space<vmem>>) attributes {dimension_semantics = [#tpu.dimension_semantics<parallel>], iteration_bounds = array<i64: 1>, scalar_prefetch = 0 : i64, scratch_operands = 0 : i64, tpu.core_type = #tpu.core_type<tc>, window_params = [{transform_indices = @transform_0, window_bounds = array<i64: 128, 32>}, {pipeline_mode = #tpu.pipeline_mode<synchronous>, transform_indices = @transform_1, window_bounds = array<i64: 1, 32>}, {pipeline_mode = #tpu.pipeline_mode<synchronous>, transform_indices = @transform_2, window_bounds = array<i64: 1, 32>}, {pipeline_mode = #tpu.pipeline_mode<synchronous>, transform_indices = @transform_3, window_bounds = array<i64: 32, 96>}, {pipeline_mode = #tpu.pipeline_mode<synchronous>, transform_indices = @transform_4, window_bounds = array<i64: 1, 96>}, {transform_indices = @transform_5, window_bounds = array<i64: 128, 96>}]} {
    %c0 = arith.constant 0 : index
    %c0_0 = arith.constant 0 : index
    %0 = vector.load %arg1[%c0, %c0_0] : memref<128x32xf32, #tpu.memory_space<vmem>>, vector<128x32xf32>
    %cst = arith.constant dense<0.000000e+00> : vector<128xf32>
    %1 = vector.multi_reduction <add>, %0, %cst [1] : vector<128x32xf32> to vector<128xf32>
    %2 = vector.shape_cast %1 : vector<128xf32> to vector<128x1xf32>
    %cst_1 = arith.constant 3.200000e+01 : f32
    %3 = vector.broadcast %cst_1 : f32 to vector<128x1xf32>
    %4 = arith.divf %2, %3 : vector<128x1xf32>
    %5 = vector.broadcast %4 : vector<128x1xf32> to vector<128x32xf32>
    %6 = arith.subf %0, %5 : vector<128x32xf32>
    %7 = arith.mulf %6, %6 : vector<128x32xf32>
    %cst_2 = arith.constant dense<0.000000e+00> : vector<128xf32>
    %8 = vector.multi_reduction <add>, %7, %cst_2 [1] : vector<128x32xf32> to vector<128xf32>
    %9 = vector.shape_cast %8 : vector<128xf32> to vector<128x1xf32>
    %cst_3 = arith.constant 3.200000e+01 : f32
    %10 = vector.broadcast %cst_3 : f32 to vector<128x1xf32>
    %11 = arith.divf %9, %10 : vector<128x1xf32>
    %cst_4 = arith.constant 9.99999974E-6 : f32
    %12 = vector.broadcast %cst_4 : f32 to vector<128x1xf32>
    %13 = arith.addf %11, %12 : vector<128x1xf32>
    %14 = math.rsqrt %13 : vector<128x1xf32>
    %15 = vector.broadcast %14 : vector<128x1xf32> to vector<128x32xf32>
    %16 = arith.mulf %6, %15 : vector<128x32xf32>
    %c0_5 = arith.constant 0 : index
    %c0_6 = arith.constant 0 : index
    %17 = vector.load %arg2[%c0_5, %c0_6] : memref<1x32xf32, #tpu.memory_space<vmem>>, vector<1x32xf32>
    %18 = vector.broadcast %17 : vector<1x32xf32> to vector<128x32xf32>
    %19 = arith.mulf %16, %18 : vector<128x32xf32>
    %c0_7 = arith.constant 0 : index
    %c0_8 = arith.constant 0 : index
    %20 = vector.load %arg3[%c0_7, %c0_8] : memref<1x32xf32, #tpu.memory_space<vmem>>, vector<1x32xf32>
    %21 = vector.broadcast %20 : vector<1x32xf32> to vector<128x32xf32>
    %22 = arith.addf %19, %21 : vector<128x32xf32>
    %23 = arith.truncf %22 : vector<128x32xf32> to vector<128x32xbf16>
    %c0_9 = arith.constant 0 : index
    %c0_10 = arith.constant 0 : index
    %24 = vector.load %arg4[%c0_9, %c0_10] : memref<32x96xbf16, #tpu.memory_space<vmem>>, vector<32x96xbf16>
    %cst_11 = arith.constant dense<0.000000e+00> : vector<128x96xf32>
    %25 = tpu.matmul %23, %24, %cst_11 {dimension_numbers = #tpu.dot_dimension_numbers<[1], [0], [0], [1], [0, 0, 1, 1], [], []>} : vector<128x32xbf16>, vector<32x96xbf16>, vector<128x96xf32> -> vector<128x96xf32>
    %c0_12 = arith.constant 0 : index
    %c0_13 = arith.constant 0 : index
    %26 = vector.load %arg5[%c0_12, %c0_13] : memref<1x96xf32, #tpu.memory_space<vmem>>, vector<1x96xf32>
    %27 = vector.broadcast %26 : vector<1x96xf32> to vector<128x96xf32>
    %28 = arith.addf %25, %27 : vector<128x96xf32>
    %c0_14 = arith.constant 0 : index
    %c0_15 = arith.constant 0 : index
    %29 = vector.load %arg6[%c0_14, %c0_15] : memref<128x96xf32, #tpu.memory_space<vmem>>, vector<128x96xf32>
    tpu.vector_store %arg6[%c0_14, %c0_15], %28 {strides = array<i32>} : memref<128x96xf32, #tpu.memory_space<vmem>>, vector<128x96xf32>,
    return
  }
  func.func @transform_0(%arg0: i32) -> (i32, i32) {
    %c0_i32 = arith.constant 0 : i32
    %c0_i32_0 = arith.constant 0 : i32
    return %arg0, %c0_i32 : i32, i32
  }
  func.func @transform_1(%arg0: i32) -> (i32, i32) {
    %c0_i32 = arith.constant 0 : i32
    %c0_i32_0 = arith.constant 0 : i32
    %c0_i32_1 = arith.constant 0 : i32
    return %c0_i32, %c0_i32_0 : i32, i32
  }
  func.func @transform_2(%arg0: i32) -> (i32, i32) {
    %c0_i32 = arith.constant 0 : i32
    %c0_i32_0 = arith.constant 0 : i32
    %c0_i32_1 = arith.constant 0 : i32
    return %c0_i32, %c0_i32_0 : i32, i32
  }
  func.func @transform_3(%arg0: i32) -> (i32, i32) {
    %c0_i32 = arith.constant 0 : i32
    %c0_i32_0 = arith.constant 0 : i32
    %c0_i32_1 = arith.constant 0 : i32
    return %c0_i32, %c0_i32_0 : i32, i32
  }
  func.func @transform_4(%arg0: i32) -> (i32, i32) {
    %c0_i32 = arith.constant 0 : i32
    %c0_i32_0 = arith.constant 0 : i32
    %c0_i32_1 = arith.constant 0 : i32
    return %c0_i32, %c0_i32_0 : i32, i32
  }
  func.func @transform_5(%arg0: i32) -> (i32, i32) {
    %c0_i32 = arith.constant 0 : i32
    %c0_i32_0 = arith.constant 0 : i32
    return %arg0, %c0_i32 : i32, i32
  }
}

</mosaic_0001>

<llo_original>
// kernel: tpu_custom_call.1
$region0: #{tpu_custom_call.1}
  #allocation0 [shape = 'u32[]', space=smem, size = 0x4, offset = 0x4, fixed_abs, tag = 'smem constant byte address 0x4 - core index']
  #allocation1 [shape = 'u32[144,128]{1,0:T(1,128)}', space=vmem, size = 0x12000, scoped, tag = 'internal scratch']
  %s0 = inlined_call_operand.vmem [shape: f32[128,32], index: 0, kind: input, shape index: {}]
  %s1 = inlined_call_operand.vmem [shape: f32[1,32], index: 1, kind: input, shape index: {}]
  %s2 = inlined_call_operand.vmem [shape: f32[1,32], index: 2, kind: input, shape index: {}]
  %s3 = inlined_call_operand.vmem [shape: bf16[32,96], index: 3, kind: input, shape index: {}]
  %s4 = inlined_call_operand.vmem [shape: f32[1,96], index: 4, kind: input, shape index: {}]
  %s5 = inlined_call_operand.vmem [shape: f32[128,96], index: 5, kind: output, shape index: {}]
  %s6 = sld [smem:[#allocation0]]
  $region30: #{tpu_custom_call.1} parent=0
    _
  %s8 = ssub.s32 1, %s6
  %s9 = scalar_select 0, %s8, %s6
  // Predicated region
  $region2: #{tpu_custom_call.1} parent=0 // pred_check
    _
  $region3: #{tpu_custom_call.1} parent=0 // pred_check_branch
    %11 = sbr.rel (0) target = $region5
  $region4: #{tpu_custom_call.1} parent=0 // pred_region
    _
  $region5: #{tpu_custom_call.1} parent=0 // pred_fallthru
    _
  // Predicated region
  $region6: #{tpu_custom_call.1} parent=0 // pred_check
    _
  $region7: #{tpu_custom_call.1} parent=0 // pred_check_branch
    %13 = sbr.rel (0) target = $region9
  $region8: #{tpu_custom_call.1} parent=0 // pred_region
    _
  $region9: #{tpu_custom_call.1} parent=0 // pred_fallthru
    _
  // Predicated region
  $region10: #{tpu_custom_call.1} parent=0 // pred_check
    _
  $region11: #{tpu_custom_call.1} parent=0 // pred_check_branch
    %15 = sbr.rel (0) target = $region13
  $region12: #{tpu_custom_call.1} parent=0 // pred_region
    _
  $region13: #{tpu_custom_call.1} parent=0 // pred_fallthru
    _
  // Predicated region
  $region14: #{tpu_custom_call.1} parent=0 // pred_check
    _
  $region15: #{tpu_custom_call.1} parent=0 // pred_check_branch
    %17 = sbr.rel (0) target = $region17
  $region16: #{tpu_custom_call.1} parent=0 // pred_region
    _
  $region17: #{tpu_custom_call.1} parent=0 // pred_fallthru
    _
  // Predicated region
  $region18: #{tpu_custom_call.1} parent=0 // pred_check
    _
  $region19: #{tpu_custom_call.1} parent=0 // pred_check_branch
    %19 = sbr.rel (0) target = $region21
  $region20: #{tpu_custom_call.1} parent=0 // pred_region
    _
  $region21: #{tpu_custom_call.1} parent=0 // pred_fallthru
    _
  %v21 = vld [vmem:[%s0] sm:$0xff]
  %v22 = vld [vmem:[%s0 + $0x8] sm:$0xff]
  %v23 = vld [vmem:[%s0 + $0x10] sm:$0xff]
  %v24 = vld [vmem:[%s0 + $0x18] sm:$0xff]
  %v25 = vld [vmem:[%s0 + $0x20] sm:$0xff]
  %v26 = vld [vmem:[%s0 + $0x28] sm:$0xff]
  %v27 = vld [vmem:[%s0 + $0x30] sm:$0xff]
  %v28 = vld [vmem:[%s0 + $0x38] sm:$0xff]
  %v29 = vld [vmem:[%s0 + $0x40] sm:$0xff]
  %v30 = vld [vmem:[%s0 + $0x48] sm:$0xff]
  %v31 = vld [vmem:[%s0 + $0x50] sm:$0xff]
  %v32 = vld [vmem:[%s0 + $0x58] sm:$0xff]
  %v33 = vld [vmem:[%s0 + $0x60] sm:$0xff]
  %v34 = vld [vmem:[%s0 + $0x68] sm:$0xff]
  %v35 = vld [vmem:[%s0 + $0x70] sm:$0xff]
  %v36 = vld [vmem:[%s0 + $0x78] sm:$0xff]
  %vm37 = vcmask 261120
  %v38 = vsel %vm37, %v21, 0.0
  %39 = vadd.xlane.f32.xlu0 %v38
  %v40 = vpop.xlane.xlu0 %39
  %v41 = vsel %vm37, %v22, 0.0
  %42 = vadd.xlane.f32.xlu0 %v41
  %v43 = vpop.xlane.xlu0 %42
  %v44 = vsel %vm37, %v23, 0.0
  %45 = vadd.xlane.f32.xlu0 %v44
  %v46 = vpop.xlane.xlu0 %45
  %v47 = vsel %vm37, %v24, 0.0
  %48 = vadd.xlane.f32.xlu0 %v47
  %v49 = vpop.xlane.xlu0 %48
  %v50 = vsel %vm37, %v25, 0.0
  %51 = vadd.xlane.f32.xlu0 %v50
  %v52 = vpop.xlane.xlu0 %51
  %v53 = vsel %vm37, %v26, 0.0
  %54 = vadd.xlane.f32.xlu0 %v53
  %v55 = vpop.xlane.xlu0 %54
  %v56 = vsel %vm37, %v27, 0.0
  %57 = vadd.xlane.f32.xlu0 %v56
  %v58 = vpop.xlane.xlu0 %57
  %v59 = vsel %vm37, %v28, 0.0
  %60 = vadd.xlane.f32.xlu0 %v59
  %v61 = vpop.xlane.xlu0 %60
  %v62 = vsel %vm37, %v29, 0.0
  %63 = vadd.xlane.f32.xlu0 %v62
  %v64 = vpop.xlane.xlu0 %63
  %v65 = vsel %vm37, %v30, 0.0
  %66 = vadd.xlane.f32.xlu0 %v65
  %v67 = vpop.xlane.xlu0 %66
  %v68 = vsel %vm37, %v31, 0.0
  %69 = vadd.xlane.f32.xlu0 %v68
  %v70 = vpop.xlane.xlu0 %69
  %v71 = vsel %vm37, %v32, 0.0
  %72 = vadd.xlane.f32.xlu0 %v71
  %v73 = vpop.xlane.xlu0 %72
  %v74 = vsel %vm37, %v33, 0.0
  %75 = vadd.xlane.f32.xlu0 %v74
  %v76 = vpop.xlane.xlu0 %75
  %v77 = vsel %vm37, %v34, 0.0
  %78 = vadd.xlane.f32.xlu0 %v77
  %v79 = vpop.xlane.xlu0 %78
  %v80 = vsel %vm37, %v35, 0.0
  %81 = vadd.xlane.f32.xlu0 %v80
  %v82 = vpop.xlane.xlu0 %81
  %v83 = vsel %vm37, %v36, 0.0
  %84 = vadd.xlane.f32.xlu0 %v83
  %v85 = vpop.xlane.xlu0 %84
  %v86 = vrcp.pop 32.0
  %v87 = vmul.f32 %v40, %v86
  %v88 = vmul.f32 %v43, %v86
  %v89 = vmul.f32 %v46, %v86
  %v90 = vmul.f32 %v49, %v86
  %v91 = vmul.f32 %v52, %v86
  %v92 = vmul.f32 %v55, %v86
  %v93 = vmul.f32 %v58, %v86
  %v94 = vmul.f32 %v61, %v86
  %v95 = vmul.f32 %v64, %v86
  %v96 = vmul.f32 %v67, %v86
  %v97 = vmul.f32 %v70, %v86
  %v98 = vmul.f32 %v73, %v86
  %v99 = vmul.f32 %v76, %v86
  %v100 = vmul.f32 %v79, %v86
  %v101 = vmul.f32 %v82, %v86
  %v102 = vmul.f32 %v85, %v86
  %v103 = vsub.f32 %v21, %v87
  %v104 = vsub.f32 %v22, %v88
  %v105 = vsub.f32 %v23, %v89
  %v106 = vsub.f32 %v24, %v90
  %v107 = vsub.f32 %v25, %v91
  %v108 = vsub.f32 %v26, %v92
  %v109 = vsub.f32 %v27, %v93
  %v110 = vsub.f32 %v28, %v94
  %v111 = vsub.f32 %v29, %v95
  %v112 = vsub.f32 %v30, %v96
  %v113 = vsub.f32 %v31, %v97
  %v114 = vsub.f32 %v32, %v98
  %v115 = vsub.f32 %v33, %v99
  %v116 = vsub.f32 %v34, %v100
  %v117 = vsub.f32 %v35, %v101
  %v118 = vsub.f32 %v36, %v102
  %v119 = vmul.f32 %v103, %v103
  %v120 = vmul.f32 %v104, %v104
  %v121 = vmul.f32 %v105, %v105
  %v122 = vmul.f32 %v106, %v106
  %v123 = vmul.f32 %v107, %v107
  %v124 = vmul.f32 %v108, %v108
  %v125 = vmul.f32 %v109, %v109
  %v126 = vmul.f32 %v110, %v110
  %v127 = vmul.f32 %v111, %v111
  %v128 = vmul.f32 %v112, %v112
  %v129 = vmul.f32 %v113, %v113
  %v130 = vmul.f32 %v114, %v114
  %v131 = vmul.f32 %v115, %v115
  %v132 = vmul.f32 %v116, %v116
  %v133 = vmul.f32 %v117, %v117
  %v134 = vmul.f32 %v118, %v118
  %v135 = vsel %vm37, %v119, 0.0
  %136 = vadd.xlane.f32.xlu0 %v135
  %v137 = vpop.xlane.xlu0 %136
  %v138 = vsel %vm37, %v120, 0.0
  %139 = vadd.xlane.f32.xlu0 %v138
  %v140 = vpop.xlane.xlu0 %139
  %v141 = vsel %vm37, %v121, 0.0
  %142 = vadd.xlane.f32.xlu0 %v141
  %v143 = vpop.xlane.xlu0 %142
  %v144 = vsel %vm37, %v122, 0.0
  %145 = vadd.xlane.f32.xlu0 %v144
  %v146 = vpop.xlane.xlu0 %145
  %v147 = vsel %vm37, %v123, 0.0
  %148 = vadd.xlane.f32.xlu0 %v147
  %v149 = vpop.xlane.xlu0 %148
  %v150 = vsel %vm37, %v124, 0.0
  %151 = vadd.xlane.f32.xlu0 %v150
  %v152 = vpop.xlane.xlu0 %151
  %v153 = vsel %vm37, %v125, 0.0
  %154 = vadd.xlane.f32.xlu0 %v153
  %v155 = vpop.xlane.xlu0 %154
  %v156 = vsel %vm37, %v126, 0.0
  %157 = vadd.xlane.f32.xlu0 %v156
  %v158 = vpop.xlane.xlu0 %157
  %v159 = vsel %vm37, %v127, 0.0
  %160 = vadd.xlane.f32.xlu0 %v159
  %v161 = vpop.xlane.xlu0 %160
  %v162 = vsel %vm37, %v128, 0.0
  %163 = vadd.xlane.f32.xlu0 %v162
  %v164 = vpop.xlane.xlu0 %163
  %v165 = vsel %vm37, %v129, 0.0
  %166 = vadd.xlane.f32.xlu0 %v165
  %v167 = vpop.xlane.xlu0 %166
  %v168 = vsel %vm37, %v130, 0.0
  %169 = vadd.xlane.f32.xlu0 %v168
  %v170 = vpop.xlane.xlu0 %169
  %v171 = vsel %vm37, %v131, 0.0
  %172 = vadd.xlane.f32.xlu0 %v171
  %v173 = vpop.xlane.xlu0 %172
  %v174 = vsel %vm37, %v132, 0.0
  %175 = vadd.xlane.f32.xlu0 %v174
  %v176 = vpop.xlane.xlu0 %175
  %v177 = vsel %vm37, %v133, 0.0
  %178 = vadd.xlane.f32.xlu0 %v177
  %v179 = vpop.xlane.xlu0 %178
  %v180 = vsel %vm37, %v134, 0.0
  %181 = vadd.xlane.f32.xlu0 %v180
  %v182 = vpop.xlane.xlu0 %181
  %v183 = vmul.f32 %v137, %v86
  %v184 = vmul.f32 %v140, %v86
  %v185 = vmul.f32 %v143, %v86
  %v186 = vmul.f32 %v146, %v86
  %v187 = vmul.f32 %v149, %v86
  %v188 = vmul.f32 %v152, %v86
  %v189 = vmul.f32 %v155, %v86
  %v190 = vmul.f32 %v158, %v86
  %v191 = vmul.f32 %v161, %v86
  %v192 = vmul.f32 %v164, %v86
  %v193 = vmul.f32 %v167, %v86
  %v194 = vmul.f32 %v170, %v86
  %v195 = vmul.f32 %v173, %v86
  %v196 = vmul.f32 %v176, %v86
  %v197 = vmul.f32 %v179, %v86
  %v198 = vmul.f32 %v182, %v86
  %v199 = vadd.f32 %v183, 1e-05
  %v200 = vadd.f32 %v184, 1e-05
  %v201 = vadd.f32 %v185, 1e-05
  %v202 = vadd.f32 %v186, 1e-05
  %v203 = vadd.f32 %v187, 1e-05
  %v204 = vadd.f32 %v188, 1e-05
  %v205 = vadd.f32 %v189, 1e-05
  %v206 = vadd.f32 %v190, 1e-05
  %v207 = vadd.f32 %v191, 1e-05
  %v208 = vadd.f32 %v192, 1e-05
  %v209 = vadd.f32 %v193, 1e-05
  %v210 = vadd.f32 %v194, 1e-05
  %v211 = vadd.f32 %v195, 1e-05
  %v212 = vadd.f32 %v196, 1e-05
  %v213 = vadd.f32 %v197, 1e-05
  %v214 = vadd.f32 %v198, 1e-05
  %v215 = vrsqrt.pop %v199
  %v216 = vrsqrt.pop %v200
  %v217 = vrsqrt.pop %v201
  %v218 = vrsqrt.pop %v202
  %v219 = vrsqrt.pop %v203
  %v220 = vrsqrt.pop %v204
  %v221 = vrsqrt.pop %v205
  %v222 = vrsqrt.pop %v206
  %v223 = vrsqrt.pop %v207
  %v224 = vrsqrt.pop %v208
  %v225 = vrsqrt.pop %v209
  %v226 = vrsqrt.pop %v210
  %v227 = vrsqrt.pop %v211
  %v228 = vrsqrt.pop %v212
  %v229 = vrsqrt.pop %v213
  %v230 = vrsqrt.pop %v214
  %v231 = vmul.f32 %v103, %v215
  %v232 = vmul.f32 %v104, %v216
  %v233 = vmul.f32 %v105, %v217
  %v234 = vmul.f32 %v106, %v218
  %v235 = vmul.f32 %v107, %v219
  %v236 = vmul.f32 %v108, %v220
  %v237 = vmul.f32 %v109, %v221
  %v238 = vmul.f32 %v110, %v222
  %v239 = vmul.f32 %v111, %v223
  %v240 = vmul.f32 %v112, %v224
  %v241 = vmul.f32 %v113, %v225
  %v242 = vmul.f32 %v114, %v226
  %v243 = vmul.f32 %v115, %v227
  %v244 = vmul.f32 %v116, %v228
  %v245 = vmul.f32 %v117, %v229
  %v246 = vmul.f32 %v118, %v230
  %v247 = vld [vmem:[%s1] sm:$0x1]
  %v249 = vlaneseq
  %v250 = vshrl.u32 %v249, 7
  %v251 = vsub.s32 0, %v250
  %v252 = vrot.slane %v247, %v251
  %v254 = vmul.f32 %v231, %v252
  %v255 = vmul.f32 %v232, %v252
  %v256 = vmul.f32 %v233, %v252
  %v257 = vmul.f32 %v234, %v252
  %v258 = vmul.f32 %v235, %v252
  %v259 = vmul.f32 %v236, %v252
  %v260 = vmul.f32 %v237, %v252
  %v261 = vmul.f32 %v238, %v252
  %v262 = vmul.f32 %v239, %v252
  %v263 = vmul.f32 %v240, %v252
  %v264 = vmul.f32 %v241, %v252
  %v265 = vmul.f32 %v242, %v252
  %v266 = vmul.f32 %v243, %v252
  %v267 = vmul.f32 %v244, %v252
  %v268 = vmul.f32 %v245, %v252
  %v269 = vmul.f32 %v246, %v252
  %v270 = vld [vmem:[%s2] sm:$0x1]
  %v272 = vlaneseq
  %v273 = vshrl.u32 %v272, 7
  %v274 = vsub.s32 0, %v273
  %v275 = vrot.slane %v270, %v274
  %v277 = vadd.f32 %v254, %v275
  %v278 = vadd.f32 %v255, %v275
  %v279 = vadd.f32 %v256, %v275
  %v280 = vadd.f32 %v257, %v275
  %v281 = vadd.f32 %v258, %v275
  %v282 = vadd.f32 %v259, %v275
  %v283 = vadd.f32 %v260, %v275
  %v284 = vadd.f32 %v261, %v275
  %v285 = vadd.f32 %v262, %v275
  %v286 = vadd.f32 %v263, %v275
  %v287 = vadd.f32 %v264, %v275
  %v288 = vadd.f32 %v265, %v275
  %v289 = vadd.f32 %v266, %v275
  %v290 = vadd.f32 %v267, %v275
  %v291 = vadd.f32 %v268, %v275
  %v292 = vadd.f32 %v269, %v275
  %v293 = vpack.c.bf16 %v278, %v277
  %v294 = vpack.c.bf16 %v280, %v279
  %v295 = vpack.c.bf16 %v282, %v281
  %v296 = vpack.c.bf16 %v284, %v283
  %v297 = vpack.c.bf16 %v286, %v285
  %v298 = vpack.c.bf16 %v288, %v287
  %v299 = vpack.c.bf16 %v290, %v289
  %v300 = vpack.c.bf16 %v292, %v291
  %v301 = vld [vmem:[%s3] sm:$0xf]
  %v302 = vld [vmem:[%s3 + $0x4] sm:$0xf]
  %v303 = vld [vmem:[%s3 + $0x8] sm:$0xf]
  %v304 = vld [vmem:[%s3 + $0xc] sm:$0xf]
  %v305 = vld [vmem:[%s4] sm:$0x1]
  %v307 = vlaneseq
  %v308 = vshrl.u32 %v307, 7
  %v309 = vsub.s32 0, %v308
  %v310 = vrot.slane %v305, %v309
  %v316 = vunpack.c.l.b16 %v301
  %v317 = vunpack.c.l.b16 %v302
  %v318 = vunpack.c.l.b16 %v303
  %v319 = vunpack.c.l.b16 %v304
  %v320 = vpack.c.b16 %v317, %v316
  %v321 = vpack.c.b16 %v319, %v318
  %v325 = vsel %vm37, %v293, 0
  %v328 = vsel %vm37, %v294, 0
  %v331 = vsel %vm37, %v295, 0
  %v334 = vsel %vm37, %v296, 0
  %v337 = vsel %vm37, %v297, 0
  %v340 = vsel %vm37, %v298, 0
  %v343 = vsel %vm37, %v299, 0
  %v346 = vsel %vm37, %v300, 0
  %348 = vmatprep.subr.bf16.mxu0 0
  %349 = vmatpush1.bf16.msra.mxu0 %v320
  %350 = vmatprep.subr.bf16.mxu0 0
  %351 = vmatpush1.bf16.msra.mxu0 %v321
  %352 = vmatprep.subr.bf16.mxu0 0
  %353 = vmatpush1.bf16.msra.mxu0 0
  %354 = vmatprep.subr.bf16.mxu0 0
  %355 = vmatpush1.bf16.msra.mxu0 0
  %356 = vmatprep.subr.bf16.mxu0 0
  %357 = vmatpush1.bf16.msra.mxu0 0
  %358 = vmatprep.subr.bf16.mxu0 0
  %359 = vmatpush1.bf16.msra.mxu0 0
  %360 = vmatprep.subr.bf16.mxu0 0
  %361 = vmatpush1.bf16.msra.mxu0 0
  %362 = vmatprep.subr.bf16.mxu0 0
  %363 = vmatpush1.bf16.msra.mxu0 0
  %364 = vmatprep.subr.bf16.mxu0 0
  %365 = vmatpush1.bf16.msra.mxu0 0
  %366 = vmatprep.subr.bf16.mxu0 0
  %367 = vmatpush1.bf16.msra.mxu0 0
  %368 = vmatprep.subr.bf16.mxu0 0
  %369 = vmatpush1.bf16.msra.mxu0 0
  %370 = vmatprep.subr.bf16.mxu0 0
  %371 = vmatpush1.bf16.msra.mxu0 0
  %372 = vmatprep.subr.bf16.mxu0 0
  %373 = vmatpush1.bf16.msra.mxu0 0
  %374 = vmatprep.subr.bf16.mxu0 0
  %375 = vmatpush1.bf16.msra.mxu0 0
  %376 = vmatprep.subr.bf16.mxu0 0
  %377 = vmatpush1.bf16.msra.mxu0 0
  %378 = vmatprep.subr.bf16.mxu0 0
  %379 = vmatpush1.bf16.msra.mxu0 0
  %380 = vmatprep.mubr.bf16.mxu0 0
  %381 = vmatmul.mubr.bf16.gmra.mrb[0].mxu0 %v325
  %v382 = vpop.f32.mrb[0].mxu0
  %v383 = vadd.f32 %v310, %v382
  %v384 = vpop.f32.mrb[0].mxu0
  %v385 = vpop.f32.mrb[0].mxu0
  %v386 = vadd.f32 %v310, %v385
  %v387 = vpop.f32.mrb[0].mxu0
  %388 = vmatprep.mubr.bf16.mxu0 0
  %389 = vmatmul.mubr.bf16.gmra.mrb[0].mxu0 %v328
  %v390 = vpop.f32.mrb[0].mxu0
  %v391 = vadd.f32 %v310, %v390
  %v392 = vpop.f32.mrb[0].mxu0
  %v393 = vpop.f32.mrb[0].mxu0
  %v394 = vadd.f32 %v310, %v393
  %v395 = vpop.f32.mrb[0].mxu0
  %396 = vmatprep.mubr.bf16.mxu0 0
  %397 = vmatmul.mubr.bf16.gmra.mrb[0].mxu0 %v331
  %v398 = vpop.f32.mrb[0].mxu0
  %v399 = vadd.f32 %v310, %v398
  %v400 = vpop.f32.mrb[0].mxu0
  %v401 = vpop.f32.mrb[0].mxu0
  %v402 = vadd.f32 %v310, %v401
  %v403 = vpop.f32.mrb[0].mxu0
  %404 = vmatprep.mubr.bf16.mxu0 0
  %405 = vmatmul.mubr.bf16.gmra.mrb[0].mxu0 %v334
  %v406 = vpop.f32.mrb[0].mxu0
  %v407 = vadd.f32 %v310, %v406
  %v408 = vpop.f32.mrb[0].mxu0
  %v409 = vpop.f32.mrb[0].mxu0
  %v410 = vadd.f32 %v310, %v409
  %v411 = vpop.f32.mrb[0].mxu0
  %412 = vmatprep.mubr.bf16.mxu0 0
  %413 = vmatmul.mubr.bf16.gmra.mrb[0].mxu0 %v337
  %v414 = vpop.f32.mrb[0].mxu0
  %v415 = vadd.f32 %v310, %v414
  %v416 = vpop.f32.mrb[0].mxu0
  %v417 = vpop.f32.mrb[0].mxu0
  %v418 = vadd.f32 %v310, %v417
  %v419 = vpop.f32.mrb[0].mxu0
  %420 = vmatprep.mubr.bf16.mxu0 0
  %421 = vmatmul.mubr.bf16.gmra.mrb[0].mxu0 %v340
  %v422 = vpop.f32.mrb[0].mxu0
  %v423 = vadd.f32 %v310, %v422
  %v424 = vpop.f32.mrb[0].mxu0
  %v425 = vpop.f32.mrb[0].mxu0
  %v426 = vadd.f32 %v310, %v425
  %v427 = vpop.f32.mrb[0].mxu0
  %428 = vmatprep.mubr.bf16.mxu0 0
  %429 = vmatmul.mubr.bf16.gmra.mrb[0].mxu0 %v343
  %v430 = vpop.f32.mrb[0].mxu0
  %v431 = vadd.f32 %v310, %v430
  %v432 = vpop.f32.mrb[0].mxu0
  %v433 = vpop.f32.mrb[0].mxu0
  %v434 = vadd.f32 %v310, %v433
  %v435 = vpop.f32.mrb[0].mxu0
  %436 = vmatprep.mubr.bf16.mxu0 0
  %437 = vmatmul.mubr.bf16.gmra.mrb[0].mxu0 %v346
  %v438 = vpop.f32.mrb[0].mxu0
  %v439 = vadd.f32 %v310, %v438
  %v440 = vpop.f32.mrb[0].mxu0
  %v441 = vpop.f32.mrb[0].mxu0
  %v442 = vadd.f32 %v310, %v441
  %v443 = vpop.f32.mrb[0].mxu0
  %444 = vdwg.mxu0
  %vm445 = vcmask 785408
  %446 = vst.msk [vmem:[%s5] sm:$0xff] %vm445, %v383
  %447 = vst.msk [vmem:[%s5 + $0x8] sm:$0xff] %vm445, %v386
  %448 = vst.msk [vmem:[%s5 + $0x10] sm:$0xff] %vm445, %v391
  %449 = vst.msk [vmem:[%s5 + $0x18] sm:$0xff] %vm445, %v394
  %450 = vst.msk [vmem:[%s5 + $0x20] sm:$0xff] %vm445, %v399
  %451 = vst.msk [vmem:[%s5 + $0x28] sm:$0xff] %vm445, %v402
  %452 = vst.msk [vmem:[%s5 + $0x30] sm:$0xff] %vm445, %v407
  %453 = vst.msk [vmem:[%s5 + $0x38] sm:$0xff] %vm445, %v410
  %454 = vst.msk [vmem:[%s5 + $0x40] sm:$0xff] %vm445, %v415
  %455 = vst.msk [vmem:[%s5 + $0x48] sm:$0xff] %vm445, %v418
  %456 = vst.msk [vmem:[%s5 + $0x50] sm:$0xff] %vm445, %v423
  %457 = vst.msk [vmem:[%s5 + $0x58] sm:$0xff] %vm445, %v426
  %458 = vst.msk [vmem:[%s5 + $0x60] sm:$0xff] %vm445, %v431
  %459 = vst.msk [vmem:[%s5 + $0x68] sm:$0xff] %vm445, %v434
  %460 = vst.msk [vmem:[%s5 + $0x70] sm:$0xff] %vm445, %v439
  %461 = vst.msk [vmem:[%s5 + $0x78] sm:$0xff] %vm445, %v442
  // Predicated region
  $region22: #{tpu_custom_call.1} parent=0 // pred_check
    _
  $region23: #{tpu_custom_call.1} parent=0 // pred_check_branch
    %463 = sbr.rel (0) target = $region25
  $region24: #{tpu_custom_call.1} parent=0 // pred_region
    _
  $region25: #{tpu_custom_call.1} parent=0 // pred_fallthru
    _
  // Predicated region
  $region26: #{tpu_custom_call.1} parent=0 // pred_check
    _
  $region27: #{tpu_custom_call.1} parent=0 // pred_check_branch
    %465 = sbr.rel (0) target = $region29
  $region28: #{tpu_custom_call.1} parent=0 // pred_region
    _
  $region29: #{tpu_custom_call.1} parent=0 // pred_fallthru
    _

</llo_original>
